<compile_context>
chip_gen: v5e
topology: v5e:2x2
jax: 0.10.0
libtpu: 0.0.40
codegen_flags: <defaults>
</compile_context>

<pallas_src>
import math

import jax
import jax.numpy as jnp
from jax.experimental import pallas as pl
from jax.experimental.pallas import tpu as pltpu


# ----------------------------------------------------------------------------
# Fused kernel: the whole Attention.forward in one kernel invocation.
# ----------------------------------------------------------------------------

def _attention_pool_kernel(x_ref, w1_ref, b1_ref, w2_ref, b2_ref, o_ref):
    """Fused attention-pooling forward.

    x_ref  : (B, S, D) f32   lstm_output, D = 2*hidden_size
    w1_ref : (D, D)    bf16  first Linear weight, stored (in, out) for x @ w1
    b1_ref : (1, D)    f32   first Linear bias
    w2_ref : (1, D)    f32   second Linear weight (out_features=1), row vector
    b2_ref : (1, 1)    f32   second Linear bias
    o_ref  : (B, D)    f32   pooled output
    """
    B, S, D = x_ref.shape
    x = x_ref[...]                                                 # (B, S, D) f32

    # ---- Linear(2H,2H) + tanh: ONE batched MXU matmul for the whole batch ----
    # bf16 inputs (scores only feed a softmax), f32 accumulation; bias applied once.
    x2 = x.reshape(B * S, D).astype(jnp.bfloat16)                  # (B*S, D) bf16
    h = jnp.tanh(
        jnp.dot(x2, w1_ref[...], preferred_element_type=jnp.float32)
        + b1_ref[...]
    )                                                              # (B*S, D) f32

    # ---- Linear(2H,1): row-vector multiply + one lane reduce for the whole batch ----
    h3 = h.reshape(B, S, D)                                        # (B, S, D)
    s = jnp.sum(h3 * w2_ref[...], axis=-1, keepdims=True) + b2_ref[...]   # (B, S, 1)

    # ---- numerically-stable softmax over the sequence axis (issued once, O(1) in B) ----
    m = jnp.max(s, axis=1, keepdims=True)                          # (B, 1, 1)
    p = jnp.exp(s - m)                                             # (B, S, 1)
    denom = jnp.sum(p, axis=1, keepdims=True)                      # (B, 1, 1)
    # Exact reciprocal (approx=False) per the correctness note; not the bottleneck here.
    wts = p * pl.reciprocal(denom, approx=False)                   # (B, S, 1)

    # ---- weighted pooling over S, single lane-dense full-ref store (f32) ----
    o_ref[...] = jnp.sum(x * wts, axis=1)                          # (B, D)


def attention_forward(lstm_output, params):
    """Equivalent of Attention.forward(lstm_output) -> (B, 2*hidden_size)."""
    B, S, D = lstm_output.shape
    vmem = pl.BlockSpec(memory_space=pltpu.MemorySpace.VMEM)
    return pl.pallas_call(
        _attention_pool_kernel,
        out_shape=jax.ShapeDtypeStruct((B, D), jnp.float32),
        in_specs=[vmem, vmem, vmem, vmem, vmem],
        out_specs=vmem,
    )(
        lstm_output,
        params["w1"].astype(jnp.bfloat16),   # bf16 weight feeds the MXU score matmul only
        params["b1"],
        params["w2"],
        params["b2"],
    )


# ----------------------------------------------------------------------------
# Deterministic parameter init (mirrors nn.Linear default uniform bounds).
# Weights are stored pre-transposed, (in, out), so the kernel does x @ w.
# ----------------------------------------------------------------------------

def init_params(key, hidden_size):
    D = 2 * hidden_size
    k1, k2, k3, k4 = jax.random.split(key, 4)
    bound = 1.0 / math.sqrt(D)
    return {
        "w1": jax.random.uniform(k1, (D, D), jnp.float32, -bound, bound),
        "b1": jax.random.uniform(k2, (1, D), jnp.float32, -bound, bound),
        "w2": jax.random.uniform(k3, (1, D), jnp.float32, -bound, bound),
        "b2": jax.random.uniform(k4, (1, 1), jnp.float32, -bound, bound),
    }


# Pure-JAX f32 reference (same math as the PyTorch module) for a sanity check.
def _reference(x, p):
    h = jnp.tanh(x @ p["w1"] + p["b1"])                 # (B, S, D)
    s = jnp.sum(h * p["w2"], axis=-1) + p["b2"][0, 0]   # (B, S)
    w = jax.nn.softmax(s, axis=1)                       # (B, S)
    return jnp.sum(x * w[..., None], axis=1)            # (B, D)


# ----------------------------------------------------------------------------

if __name__ == "__main__":
    key = jax.random.PRNGKey(0)
    kp, kx = jax.random.split(key)

    # Attention(hidden_size=32) applied to a bi-LSTM output: (B, S, 2*H)
    B, S, H = 2, 8, 32
    D = 2 * H

    params = init_params(kp, H)
    lstm_output = jax.random.normal(kx, (B, S, D), jnp.float32)

    fwd = jax.jit(attention_forward)
    out = fwd(lstm_output, params)
    jax.block_until_ready(out)

    assert out.shape == (B, D) and out.dtype == jnp.float32

    ref = _reference(lstm_output, params)
    # Tolerance accounts for the bf16 score-matmul path (scores only feed a softmax).
    assert bool(jnp.allclose(out, ref, atol=2e-2, rtol=2e-2)), "mismatch vs reference"

    print("KERNEL_OK")
</pallas_src>

<mosaic_0001>
module attributes {stable_mosaic.version = 11 : i64} {
  func.func @_attention_pool_kernel(%arg0: memref<2x8x64xf32, #tpu.memory_space<vmem>>, %arg1: memref<64x64xbf16, #tpu.memory_space<vmem>>, %arg2: memref<1x64xf32, #tpu.memory_space<vmem>>, %arg3: memref<1x64xf32, #tpu.memory_space<vmem>>, %arg4: memref<1x1xf32, #tpu.memory_space<vmem>>, %arg5: memref<2x64xf32, #tpu.memory_space<vmem>>) attributes {dimension_semantics = [], scalar_prefetch = 0 : i64, scratch_operands = 0 : i64, tpu.core_type = #tpu.core_type<tc>} {
    %c0 = arith.constant 0 : index
    %c0_0 = arith.constant 0 : index
    %c0_1 = arith.constant 0 : index
    %0 = vector.load %arg0[%c0, %c0_0, %c0_1] : memref<2x8x64xf32, #tpu.memory_space<vmem>>, vector<2x8x64xf32>
    %1 = vector.shape_cast %0 : vector<2x8x64xf32> to vector<16x64xf32>
    %2 = arith.truncf %1 : vector<16x64xf32> to vector<16x64xbf16>
    %c0_2 = arith.constant 0 : index
    %c0_3 = arith.constant 0 : index
    %3 = vector.load %arg1[%c0_2, %c0_3] : memref<64x64xbf16, #tpu.memory_space<vmem>>, vector<64x64xbf16>
    %cst = arith.constant dense<0.000000e+00> : vector<16x64xf32>
    %4 = tpu.matmul %2, %3, %cst {dimension_numbers = #tpu.dot_dimension_numbers<[1], [0], [0], [1], [0, 0, 1, 1], [], []>} : vector<16x64xbf16>, vector<64x64xbf16>, vector<16x64xf32> -> vector<16x64xf32>
    %c0_4 = arith.constant 0 : index
    %c0_5 = arith.constant 0 : index
    %5 = vector.load %arg2[%c0_4, %c0_5] : memref<1x64xf32, #tpu.memory_space<vmem>>, vector<1x64xf32>
    %6 = vector.broadcast %5 : vector<1x64xf32> to vector<16x64xf32>
    %7 = arith.addf %4, %6 : vector<16x64xf32>
    %8 = math.tanh %7 : vector<16x64xf32>
    %9 = vector.shape_cast %8 : vector<16x64xf32> to vector<2x8x64xf32>
    %c0_6 = arith.constant 0 : index
    %c0_7 = arith.constant 0 : index
    %10 = vector.load %arg3[%c0_6, %c0_7] : memref<1x64xf32, #tpu.memory_space<vmem>>, vector<1x64xf32>
    %11 = vector.shape_cast %10 : vector<1x64xf32> to vector<1x1x64xf32>
    %12 = vector.broadcast %11 : vector<1x1x64xf32> to vector<2x8x64xf32>
    %13 = arith.mulf %9, %12 : vector<2x8x64xf32>
    %cst_8 = arith.constant dense<0.000000e+00> : vector<2x8xf32>
    %14 = vector.multi_reduction <add>, %13, %cst_8 [2] : vector<2x8x64xf32> to vector<2x8xf32>
    %15 = vector.shape_cast %14 : vector<2x8xf32> to vector<2x8x1xf32>
    %c0_9 = arith.constant 0 : index
    %c0_10 = arith.constant 0 : index
    %16 = vector.load %arg4[%c0_9, %c0_10] : memref<1x1xf32, #tpu.memory_space<vmem>>, vector<1x1xf32>
    %17 = vector.shape_cast %16 : vector<1x1xf32> to vector<1x1x1xf32>
    %18 = vector.broadcast %17 : vector<1x1x1xf32> to vector<2x8x1xf32>
    %19 = arith.addf %15, %18 : vector<2x8x1xf32>
    %cst_11 = arith.constant dense<0xFF800000> : vector<2x1xf32>
    %20 = vector.multi_reduction <maximumf>, %19, %cst_11 [1] : vector<2x8x1xf32> to vector<2x1xf32>
    %21 = vector.shape_cast %20 : vector<2x1xf32> to vector<2x1x1xf32>
    %22 = vector.broadcast %21 : vector<2x1x1xf32> to vector<2x8x1xf32>
    %23 = arith.subf %19, %22 : vector<2x8x1xf32>
    %24 = math.exp %23 : vector<2x8x1xf32>
    %cst_12 = arith.constant dense<0.000000e+00> : vector<2x1xf32>
    %25 = vector.multi_reduction <add>, %24, %cst_12 [1] : vector<2x8x1xf32> to vector<2x1xf32>
    %26 = vector.shape_cast %25 : vector<2x1xf32> to vector<2x1x1xf32>
    %27 = tpu.reciprocal %26 : vector<2x1x1xf32> -> vector<2x1x1xf32>
    %28 = vector.broadcast %27 : vector<2x1x1xf32> to vector<2x8x1xf32>
    %29 = arith.mulf %24, %28 : vector<2x8x1xf32>
    %30 = vector.broadcast %29 : vector<2x8x1xf32> to vector<2x8x64xf32>
    %31 = arith.mulf %0, %30 : vector<2x8x64xf32>
    %cst_13 = arith.constant dense<0.000000e+00> : vector<2x64xf32>
    %32 = vector.multi_reduction <add>, %31, %cst_13 [1] : vector<2x8x64xf32> to vector<2x64xf32>
    %c0_14 = arith.constant 0 : index
    %c0_15 = arith.constant 0 : index
    %33 = vector.load %arg5[%c0_14, %c0_15] : memref<2x64xf32, #tpu.memory_space<vmem>>, vector<2x64xf32>
    tpu.vector_store %arg5[%c0_14, %c0_15], %32 {strides = array<i32>} : memref<2x64xf32, #tpu.memory_space<vmem>>, vector<2x64xf32>,
    return
  }
}

</mosaic_0001>

<llo_original>
// kernel: attention_forward.1
$region0: #{attention_forward.1}
  #allocation0 [shape = 'u32[]', space=smem, size = 0x4, offset = 0x4, fixed_abs, tag = 'smem constant byte address 0x4 - core index']
  #allocation1 [shape = 'u32[72,128]{1,0:T(1,128)}', space=vmem, size = 0x9000, scoped, tag = 'internal scratch']
  #allocation2 [shape = 'f32[1,1]{1,0:T(1,128)S(1)}', space=vmem, size = 0x200, scoped, tag = 'scoped memory for attention_forward.1']
  %s0 = inlined_call_operand.vmem [shape: f32[2,8,64], index: 0, kind: input, shape index: {}]
  %s1 = inlined_call_operand.vmem [shape: bf16[64,64], index: 1, kind: input, shape index: {}]
  %s2 = inlined_call_operand.vmem [shape: f32[1,64], index: 2, kind: input, shape index: {}]
  %s3 = inlined_call_operand.vmem [shape: f32[1,64], index: 3, kind: input, shape index: {}]
  %s4 = inlined_call_operand.<no memory space> [shape: f32[1,1], index: 4, kind: input, shape index: {}]
  %s5 = inlined_call_operand.hbm [shape: f32[2,64], index: 5, kind: output, shape index: {}]
  %s6 = sld [smem:[#allocation0]]
  $region30: #{attention_forward.1} parent=0
    _
  %s8 = ssub.s32 1, %s6
  %s9 = scalar_select 0, %s8, %s6
  %v10 = vstv %s4
  %11 = vst [vmem:[#allocation2] sm:$0x1] %v10
  $region1: #{attention_forward.1} parent=0
    #allocation3 [shape = 'u8[1024]{0}', space=vmem, size = 0x400, scoped, tag = 'output window, operand 0, single buffered']
    #allocation4 [shape = 's32[1]{0}', space=sflag, size = 0x4, scoped, tag = 'scoped memory for attention_forward.1']
    %12 = vsyncpa [#allocation4], 0
    // Predicated region
    $region2: #{attention_forward.1} parent=1 // pred_check
      _
    $region3: #{attention_forward.1} parent=1 // pred_check_branch
      %14 = sbr.rel (0) target = $region5
    $region4: #{attention_forward.1} parent=1 // pred_region
      _
    $region5: #{attention_forward.1} parent=1 // pred_fallthru
      _
    // Predicated region
    $region6: #{attention_forward.1} parent=1 // pred_check
      _
    $region7: #{attention_forward.1} parent=1 // pred_check_branch
      %16 = sbr.rel (0) target = $region9
    $region8: #{attention_forward.1} parent=1 // pred_region
      _
    $region9: #{attention_forward.1} parent=1 // pred_fallthru
      _
    // Predicated region
    $region10: #{attention_forward.1} parent=1 // pred_check
      _
    $region11: #{attention_forward.1} parent=1 // pred_check_branch
      %18 = sbr.rel (0) target = $region13
    $region12: #{attention_forward.1} parent=1 // pred_region
      _
    $region13: #{attention_forward.1} parent=1 // pred_fallthru
      _
    // Predicated region
    $region14: #{attention_forward.1} parent=1 // pred_check
      _
    $region15: #{attention_forward.1} parent=1 // pred_check_branch
      %20 = sbr.rel (0) target = $region17
    $region16: #{attention_forward.1} parent=1 // pred_region
      _
    $region17: #{attention_forward.1} parent=1 // pred_fallthru
      _
    // Predicated region
    $region18: #{attention_forward.1} parent=1 // pred_check
      _
    $region19: #{attention_forward.1} parent=1 // pred_check_branch
      %22 = sbr.rel (0) target = $region21
    $region20: #{attention_forward.1} parent=1 // pred_region
      _
    $region21: #{attention_forward.1} parent=1 // pred_fallthru
      _
    %v24 = vld [vmem:[%s0] sm:$0xff]
    %v25 = vld [vmem:[%s0 + $0x8] sm:$0xff]
    %v26 = vpack.c.bf16 %v25, %v24
    %v27 = vld [vmem:[%s1] sm:$0xf]
    %v28 = vld [vmem:[%s1 + $0x4] sm:$0xf]
    %v29 = vld [vmem:[%s1 + $0x8] sm:$0xf]
    %v30 = vld [vmem:[%s1 + $0xc] sm:$0xf]
    %v31 = vld [vmem:[%s1 + $0x10] sm:$0xf]
    %v32 = vld [vmem:[%s1 + $0x14] sm:$0xf]
    %v33 = vld [vmem:[%s1 + $0x18] sm:$0xf]
    %v34 = vld [vmem:[%s1 + $0x1c] sm:$0xf]
    %v35 = vld [vmem:[%s2] sm:$0x1]
    %v37 = vperm.slane %v35, 0
    %v47 = vunpack.c.l.b16 %v27
    %v48 = vunpack.c.l.b16 %v28
    %v49 = vunpack.c.l.b16 %v29
    %v50 = vunpack.c.l.b16 %v30
    %v51 = vunpack.c.l.b16 %v31
    %v52 = vunpack.c.l.b16 %v32
    %v53 = vunpack.c.l.b16 %v33
    %v54 = vunpack.c.l.b16 %v34
    %v55 = vpack.c.b16 %v48, %v47
    %v56 = vpack.c.b16 %v50, %v49
    %v57 = vpack.c.b16 %v52, %v51
    %v58 = vpack.c.b16 %v54, %v53
    %vm63 = vcmask 523264
    %v65 = vsel %vm63, %v26, 0
    %67 = vmatpush.bf16.msra.mxu0 0
    %68 = vmatpush.bf16.msra.mxu0 0
    %69 = vmatpush.bf16.msra.mxu0 0
    %70 = vmatpush.bf16.msra.mxu0 0
    %71 = vmatpush.bf16.msra.mxu0 %v58
    %72 = vmatpush.bf16.msra.mxu0 %v57
    %73 = vmatpush.bf16.msra.mxu0 %v56
    %74 = vmatpush.bf16.msra.mxu0 %v55
    %75 = vmatmul.bf16.gmra.mxu0 %v65
    %v76 = vpop.f32.mrf.mxu0
    %v77 = vadd.f32 %v37, %v76
    %v78 = vpop.f32.mrf.mxu0
    %v79 = vadd.f32 %v37, %v78
    %80 = vdwg.mxu0
    %v81 = vtanh.pop %v77
    %v82 = vtanh.pop %v79
    %v83 = vld [vmem:[%s3] sm:$0x1]
    %v85 = vperm.slane %v83, 0
    %v87 = vmul.f32 %v81, %v85
    %v88 = vmul.f32 %v82, %v85
    %v89 = vsel %vm63, %v87, 0.0
    %90 = vadd.xlane.f32.xlu0 %v89
    %v91 = vpop.xlane.xlu0 %90
    %v92 = vsel %vm63, %v88, 0.0
    %93 = vadd.xlane.f32.xlu0 %v92
    %v94 = vpop.xlane.xlu0 %93
    %v95 = vld [vmem:[#allocation2] sm:$0x1]
    %v97 = vperm.slane %v95, 0
    %v99 = vadd.f32 %v91, %v97
    %v100 = vadd.f32 %v94, %v97
    %vm101 = vcmask 7168
    %v102 = vsel %vm101, %v99, -inf
    %v103 = vrot.slane %v102, 4
    %v104 = vmax.f32 %v102, %v103
    %v105 = vrot.slane %v104, 2
    %v106 = vmax.f32 %v104, %v105
    %v107 = vrot.slane %v106, 1
    %v108 = vmax.f32 %v106, %v107
    %v109 = vsel %vm101, %v100, -inf
    %v110 = vrot.slane %v109, 4
    %v111 = vmax.f32 %v109, %v110
    %v112 = vrot.slane %v111, 2
    %v113 = vmax.f32 %v111, %v112
    %v114 = vrot.slane %v113, 1
    %v115 = vmax.f32 %v113, %v114
    %v116 = vsub.f32 %v99, %v108
    %v117 = vsub.f32 %v100, %v115
    %v118 = vmul.f32 %v116, 1.442695
    %v119 = vpow.pop %v118
    %v120 = vmul.f32 %v117, 1.442695
    %v121 = vpow.pop %v120
    %v122 = vsel %vm101, %v119, 0.0
    %v123 = vrot.slane %v122, 4
    %v124 = vadd.f32 %v122, %v123
    %v125 = vrot.slane %v124, 2
    %v126 = vadd.f32 %v124, %v125
    %v127 = vrot.slane %v126, 1
    %v128 = vadd.f32 %v126, %v127
    %v129 = vsel %vm101, %v121, 0.0
    %v130 = vrot.slane %v129, 4
    %v131 = vadd.f32 %v129, %v130
    %v132 = vrot.slane %v131, 2
    %v133 = vadd.f32 %v131, %v132
    %v134 = vrot.slane %v133, 1
    %v135 = vadd.f32 %v133, %v134
    %v136 = vrcp.pop %v128
    %v137 = vmul.f32 %v128, %v136
    %v138 = vsub.f32 1.0, %v137
    %v139 = vmul.f32 %v136, %v138
    %v140 = vadd.f32 %v136, %v139
    %vm141 = vweird.f32 %v128
    %vm142 = vweird.f32 %v136
    %vm143 = vmor %vm141, %vm142
    %v144 = vsel %vm143, %v136, %v140
    %v145 = vand.u32 2147483647, %v128
    %vm146 = vcmp.eq.f32.partialorder %v145, 8.507059e+37
    %v147 = vand.u32 %v128, 2147483648
    %v148 = vor.u32 1.1754944e-38, %v147
    %v149 = vsel %vm146, %v148, %v144
    %v150 = vrcp.pop %v135
    %v151 = vmul.f32 %v135, %v150
    %v152 = vsub.f32 1.0, %v151
    %v153 = vmul.f32 %v150, %v152
    %v154 = vadd.f32 %v150, %v153
    %vm155 = vweird.f32 %v135
    %vm156 = vweird.f32 %v150
    %vm157 = vmor %vm155, %vm156
    %v158 = vsel %vm157, %v150, %v154
    %v159 = vand.u32 2147483647, %v135
    %vm160 = vcmp.eq.f32.partialorder %v159, 8.507059e+37
    %v161 = vand.u32 %v135, 2147483648
    %v162 = vor.u32 1.1754944e-38, %v161
    %v163 = vsel %vm160, %v162, %v158
    %v164 = vmul.f32 %v119, %v149
    %v165 = vmul.f32 %v121, %v163
    %167 = vset.pattern.permute.xlu0 0
    %168 = vperm.xlu0 %167, %v164
    %v169 = vpop.permute.xlu0 %168
    %172 = vset.pattern.permute.xlu0 0
    %173 = vperm.xlu0 %172, %v165
    %v174 = vpop.permute.xlu0 %173
    %v176 = vmul.f32 %v24, %v169
    %v177 = vmul.f32 %v25, %v174
    %v178 = vsel %vm63, %v176, 0.0
    %v179 = vrot.slane %v178, 4
    %v180 = vadd.f32 %v178, %v179
    %v181 = vrot.slane %v180, 2
    %v182 = vadd.f32 %v180, %v181
    %v183 = vrot.slane %v182, 1
    %v184 = vadd.f32 %v182, %v183
    %v185 = vsel %vm63, %v177, 0.0
    %v186 = vrot.slane %v185, 4
    %v187 = vadd.f32 %v185, %v186
    %v188 = vrot.slane %v187, 2
    %v189 = vadd.f32 %v187, %v188
    %v190 = vrot.slane %v189, 1
    %v191 = vadd.f32 %v189, %v190
    %vm194 = vcmask 1041409
    %v195 = vsel %vm194, %v191, %v184
    %vm197 = vcmask 517120
    %198 = vst.msk [vmem:[#allocation3] sm:$0x3] %vm197, %v195
    // Predicated region
    $region22: #{attention_forward.1} parent=1 // pred_check
      _
    $region23: #{attention_forward.1} parent=1 // pred_check_branch
      %200 = sbr.rel (0) target = $region25
    $region24: #{attention_forward.1} parent=1 // pred_region
      %202 = vsyncadd [#allocation4], 0
      %s204 = sshll.u32 [#allocation3], 4
      %s205 = int_to_ptr.vmem [resolvable:$true] %s204
      %s206 = sshll.u32 %s5, 4
      %s207 = int_to_ptr.hbm [resolvable:$true] %s206
      %209 = dma.vmem_to_hbm [thread:$0]  %s205, 32, %s207, [#allocation4]
    $region25: #{attention_forward.1} parent=1 // pred_fallthru
      _
    // Predicated region
    $region26: #{attention_forward.1} parent=1 // pred_check
      _
    $region27: #{attention_forward.1} parent=1 // pred_check_branch
      %211 = sbr.rel (0) target = $region29
    $region28: #{attention_forward.1} parent=1 // pred_region
      %213 = dma.done [#allocation4], 32
    $region29: #{attention_forward.1} parent=1 // pred_fallthru
      _
    %214 = vsyncpa [#allocation4], 1

</llo_original>
